<compile_context>
chip_gen: v6e
topology: v6e:2x2x1
jax: 0.10.0
libtpu: 0.0.40
codegen_flags: <defaults>
</compile_context>

<pallas_src>
import math
import jax
import jax.numpy as jnp
from jax.experimental import pallas as pl
from jax.experimental.pallas import tpu as pltpu


def self_attention_kernel(x_ref, wqkv_ref, bqkv_ref, o_ref):
    # x_ref:    (Bt, S, D)   block of batch elements
    # wqkv_ref: (D, 3D)      pre-transposed, query part pre-scaled by 1/sqrt(D)
    # bqkv_ref: (1, 3D)      fused bias, query part pre-scaled
    Bt, S, D = x_ref.shape
    x = x_ref[...]

    # Fused QKV projection: single MXU pass over Bt*S rows, 3D output lanes.
    x2 = x.reshape(Bt * S, D)
    qkv = jnp.dot(x2, wqkv_ref[...],
                  preferred_element_type=jnp.float32) + bqkv_ref[...]
    qkv = qkv.reshape(Bt, S, 3 * D)
    q = qkv[..., 0 * D:1 * D]
    k = qkv[..., 1 * D:2 * D]
    v = qkv[..., 2 * D:3 * D]

    # Attention scores (Bt, S, S): contract last dims, no transpose needed.
    # The 1/sqrt(D) scale is already folded into q (via Wq / bq).
    scores = jnp.einsum('bqd,bkd->bqk', q, k,
                        preferred_element_type=jnp.float32)

    # Softmax over the last axis, fully in f32.
    m = jnp.max(scores, axis=-1, keepdims=True)
    p = jnp.exp(scores - m)
    denom = jnp.sum(p, axis=-1, keepdims=True)
    attn = p * pl.reciprocal(denom, approx=False)

    # Output (Bt, S, D).
    out = jnp.einsum('bqk,bkd->bqd', attn, v,
                     preferred_element_type=jnp.float32)
    o_ref[...] = out.astype(o_ref.dtype)


def self_attention(x, wq, bq, wk, bk, wv, bv, *, block_b=None):
    B, S, D = x.shape
    scale = 1.0 / math.sqrt(D)

    # Host-side (trace-time) prep: fold the softmax scale into the query
    # projection, fuse Q/K/V, and pre-transpose to (in_features, out_features)
    # so the kernel never transposes weights on the XLU.
    wqkv_t = jnp.concatenate([wq * scale, wk, wv], axis=0).T        # (D, 3D)
    bqkv = jnp.concatenate([bq * scale, bk, bv]).reshape(1, 3 * D)  # (1, 3D)

    # Pick the batch tile: biggest divisor of B moving ~2 MiB of x per step,
    # but keep at least 2 grid steps when possible so both v7x cores are fed.
    if block_b is None:
        bytes_per_batch = S * D * x.dtype.itemsize
        target = max(1, (2 << 20) // max(1, bytes_per_batch))
        target = min(target, max(1, B // 2))
        block_b = 1
        for cand in range(1, B + 1):
            if B % cand == 0 and cand <= target:
                block_b = cand
    grid = (B // block_b,)

    return pl.pallas_call(
        self_attention_kernel,
        out_shape=jax.ShapeDtypeStruct((B, S, D), x.dtype),
        grid_spec=pltpu.PrefetchScalarGridSpec(
            num_scalar_prefetch=0,
            grid=grid,
            in_specs=[
                pl.BlockSpec((block_b, S, D), lambda b: (b, 0, 0)),  # x
                pl.BlockSpec((D, 3 * D), lambda b: (0, 0)),          # fused W
                pl.BlockSpec((1, 3 * D), lambda b: (0, 0)),          # fused bias
            ],
            out_specs=pl.BlockSpec((block_b, S, D), lambda b: (b, 0, 0)),
        ),
        compiler_params=pltpu.CompilerParams(
            dimension_semantics=("parallel",),
            vmem_limit_bytes=48 << 20),   # safe on v5e/v6e (128 MiB) and v7x (64 MiB)
    )(x, wqkv_t, bqkv)


def reference(x, wq, bq, wk, bk, wv, bv):
    q = x @ wq.T + bq
    k = x @ wk.T + bk
    v = x @ wv.T + bv
    d = x.shape[-1]
    scores = (q @ jnp.swapaxes(k, -2, -1)) / math.sqrt(d)
    attn = jax.nn.softmax(scores, axis=-1)
    return attn @ v


if __name__ == "__main__":
    B, S, D = 2, 8, 32
    key = jax.random.PRNGKey(0)
    kx, kwq, kbq, kwk, kbk, kwv, kbv = jax.random.split(key, 7)

    x = jax.random.normal(kx, (B, S, D), dtype=jnp.float32)

    # nn.Linear-shaped parameters: weight (out, in) = (D, D), bias (D,)
    bound = 1.0 / math.sqrt(D)
    wq = jax.random.uniform(kwq, (D, D), minval=-bound, maxval=bound)
    bq = jax.random.uniform(kbq, (D,), minval=-bound, maxval=bound)
    wk = jax.random.uniform(kwk, (D, D), minval=-bound, maxval=bound)
    bk = jax.random.uniform(kbk, (D,), minval=-bound, maxval=bound)
    wv = jax.random.uniform(kwv, (D, D), minval=-bound, maxval=bound)
    bv = jax.random.uniform(kbv, (D,), minval=-bound, maxval=bound)

    out = self_attention(x, wq, bq, wk, bk, wv, bv)
    jax.block_until_ready(out)

    ref = reference(x, wq, bq, wk, bk, wv, bv)
    assert out.shape == (B, S, D)
    assert jnp.allclose(out, ref, atol=1e-5, rtol=1e-5), (
        f"max abs err = {jnp.max(jnp.abs(out - ref))}")

    print("KERNEL_OK")
</pallas_src>

<mosaic_0001>
module attributes {stable_mosaic.version = 11 : i64} {
  func.func @self_attention_kernel(%arg0: i32, %arg1: memref<1x8x32xf32, #tpu.memory_space<vmem>>, %arg2: memref<32x96xf32, #tpu.memory_space<vmem>>, %arg3: memref<1x96xf32, #tpu.memory_space<vmem>>, %arg4: memref<1x8x32xf32, #tpu.memory_space<vmem>>) attributes {dimension_semantics = [#tpu.dimension_semantics<parallel>], iteration_bounds = array<i64: 2>, scalar_prefetch = 0 : i64, scratch_operands = 0 : i64, tpu.core_type = #tpu.core_type<tc>, window_params = [{transform_indices = @transform_0, window_bounds = array<i64: 1, 8, 32>}, {pipeline_mode = #tpu.pipeline_mode<synchronous>, transform_indices = @transform_1, window_bounds = array<i64: 32, 96>}, {pipeline_mode = #tpu.pipeline_mode<synchronous>, transform_indices = @transform_2, window_bounds = array<i64: 1, 96>}, {transform_indices = @transform_3, window_bounds = array<i64: 1, 8, 32>}]} {
    %c0 = arith.constant 0 : index
    %c0_0 = arith.constant 0 : index
    %c0_1 = arith.constant 0 : index
    %0 = vector.load %arg1[%c0, %c0_0, %c0_1] : memref<1x8x32xf32, #tpu.memory_space<vmem>>, vector<1x8x32xf32>
    %1 = vector.shape_cast %0 : vector<1x8x32xf32> to vector<8x32xf32>
    %c0_2 = arith.constant 0 : index
    %c0_3 = arith.constant 0 : index
    %2 = vector.load %arg2[%c0_2, %c0_3] : memref<32x96xf32, #tpu.memory_space<vmem>>, vector<32x96xf32>
    %cst = arith.constant dense<0.000000e+00> : vector<8x96xf32>
    %3 = tpu.matmul %1, %2, %cst {dimension_numbers = #tpu.dot_dimension_numbers<[1], [0], [0], [1], [0, 0, 1, 1], [], []>} : vector<8x32xf32>, vector<32x96xf32>, vector<8x96xf32> -> vector<8x96xf32>
    %c0_4 = arith.constant 0 : index
    %c0_5 = arith.constant 0 : index
    %4 = vector.load %arg3[%c0_4, %c0_5] : memref<1x96xf32, #tpu.memory_space<vmem>>, vector<1x96xf32>
    %5 = vector.broadcast %4 : vector<1x96xf32> to vector<8x96xf32>
    %6 = arith.addf %3, %5 : vector<8x96xf32>
    %7 = vector.shape_cast %6 : vector<8x96xf32> to vector<1x8x96xf32>
    %8 = vector.extract_strided_slice %7 {offsets = [0, 0, 0], sizes = [1, 8, 32], strides = [1, 1, 1]} : vector<1x8x96xf32> to vector<1x8x32xf32>
    %9 = vector.extract_strided_slice %7 {offsets = [0, 0, 32], sizes = [1, 8, 32], strides = [1, 1, 1]} : vector<1x8x96xf32> to vector<1x8x32xf32>
    %10 = vector.extract_strided_slice %7 {offsets = [0, 0, 64], sizes = [1, 8, 32], strides = [1, 1, 1]} : vector<1x8x96xf32> to vector<1x8x32xf32>
    "tpu.trace_start"() <{level = 10 : i32, message = "bqd,bkd->bqk"}> : () -> ()
    %cst_6 = arith.constant dense<0.000000e+00> : vector<1x8x8xf32>
    %11 = tpu.matmul %8, %9, %cst_6 {dimension_numbers = #tpu.dot_dimension_numbers<[2], [2], [1], [1], [0, 0, 0, 1, 1, 1], [0], [0]>} : vector<1x8x32xf32>, vector<1x8x32xf32>, vector<1x8x8xf32> -> vector<1x8x8xf32>
    "tpu.trace_stop"() : () -> ()
    %cst_7 = arith.constant dense<0xFF800000> : vector<1x8xf32>
    %12 = vector.multi_reduction <maximumf>, %11, %cst_7 [2] : vector<1x8x8xf32> to vector<1x8xf32>
    %13 = vector.shape_cast %12 : vector<1x8xf32> to vector<1x8x1xf32>
    %14 = vector.broadcast %13 : vector<1x8x1xf32> to vector<1x8x8xf32>
    %15 = arith.subf %11, %14 : vector<1x8x8xf32>
    %16 = math.exp %15 : vector<1x8x8xf32>
    %cst_8 = arith.constant dense<0.000000e+00> : vector<1x8xf32>
    %17 = vector.multi_reduction <add>, %16, %cst_8 [2] : vector<1x8x8xf32> to vector<1x8xf32>
    %18 = vector.shape_cast %17 : vector<1x8xf32> to vector<1x8x1xf32>
    %19 = tpu.reciprocal %18 : vector<1x8x1xf32> -> vector<1x8x1xf32>
    %20 = vector.broadcast %19 : vector<1x8x1xf32> to vector<1x8x8xf32>
    %21 = arith.mulf %16, %20 : vector<1x8x8xf32>
    "tpu.trace_start"() <{level = 10 : i32, message = "bqk,bkd->bqd"}> : () -> ()
    %cst_9 = arith.constant dense<0.000000e+00> : vector<1x8x32xf32>
    %22 = tpu.matmul %21, %10, %cst_9 {dimension_numbers = #tpu.dot_dimension_numbers<[2], [1], [1], [2], [0, 0, 0, 1, 1, 2], [0], [0]>} : vector<1x8x8xf32>, vector<1x8x32xf32>, vector<1x8x32xf32> -> vector<1x8x32xf32>
    "tpu.trace_stop"() : () -> ()
    %c0_10 = arith.constant 0 : index
    %c0_11 = arith.constant 0 : index
    %c0_12 = arith.constant 0 : index
    %23 = vector.load %arg4[%c0_10, %c0_11, %c0_12] : memref<1x8x32xf32, #tpu.memory_space<vmem>>, vector<1x8x32xf32>
    tpu.vector_store %arg4[%c0_10, %c0_11, %c0_12], %22 {strides = array<i32>} : memref<1x8x32xf32, #tpu.memory_space<vmem>>, vector<1x8x32xf32>,
    return
  }
  func.func @transform_0(%arg0: i32) -> (i32, i32, i32) {
    %c0_i32 = arith.constant 0 : i32
    %c0_i32_0 = arith.constant 0 : i32
    %c0_i32_1 = arith.constant 0 : i32
    return %arg0, %c0_i32, %c0_i32_0 : i32, i32, i32
  }
  func.func @transform_1(%arg0: i32) -> (i32, i32) {
    %c0_i32 = arith.constant 0 : i32
    %c0_i32_0 = arith.constant 0 : i32
    %c0_i32_1 = arith.constant 0 : i32
    return %c0_i32, %c0_i32_0 : i32, i32
  }
  func.func @transform_2(%arg0: i32) -> (i32, i32) {
    %c0_i32 = arith.constant 0 : i32
    %c0_i32_0 = arith.constant 0 : i32
    %c0_i32_1 = arith.constant 0 : i32
    return %c0_i32, %c0_i32_0 : i32, i32
  }
  func.func @transform_3(%arg0: i32) -> (i32, i32, i32) {
    %c0_i32 = arith.constant 0 : i32
    %c0_i32_0 = arith.constant 0 : i32
    %c0_i32_1 = arith.constant 0 : i32
    return %arg0, %c0_i32, %c0_i32_0 : i32, i32, i32
  }
}

</mosaic_0001>

<llo_original>
// kernel: tpu_custom_call.1
$region0: #{tpu_custom_call.1}
  #allocation0 [shape = 'u32[]', space=smem, size = 0x4, offset = 0x4, fixed_abs, tag = 'smem constant byte address 0x4 - core index']
  #allocation1 [shape = 'u32[144,128]{1,0:T(1,128)}', space=vmem, size = 0x12000, scoped, tag = 'internal scratch']
  %s0 = inlined_call_operand.hbm [shape: f32[2,8,32], index: 0, kind: input, shape index: {}]
  %s1 = inlined_call_operand.hbm [shape: f32[32,96], index: 1, kind: input, shape index: {}]
  %s2 = inlined_call_operand.vmem [shape: f32[1,96], index: 2, kind: input, shape index: {}]
  %s3 = inlined_call_operand.hbm [shape: f32[2,8,32], index: 3, kind: output, shape index: {}]
  %s4 = sld [smem:[#allocation0]]
  $region53: #{tpu_custom_call.1} parent=0
    _
  %s6 = ssub.s32 1, %s4
  %s7 = scalar_select 0, %s6, %s4
  $region1: #{tpu_custom_call.1} parent=0
    #allocation2 [shape = 'u8[8192]{0}', space=vmem, size = 0x2000, scoped, tag = 'input window, operand 0']
    #allocation3 [shape = 's32[2]{0}', space=sflag, size = 0x8, scoped, tag = 'scoped memory for tpu_custom_call.1']
    #allocation4 [shape = 's32[2]{0}', space=sflag, size = 0x8, scoped, tag = 'scoped memory for tpu_custom_call.1']
    #allocation5 [shape = 'u8[16384]{0}', space=vmem, size = 0x4000, scoped, tag = 'input window, operand 1, single buffered']
    #allocation6 [shape = 's32[1]{0}', space=sflag, size = 0x4, scoped, tag = 'scoped memory for tpu_custom_call.1']
    #allocation7 [shape = 'u8[8192]{0}', space=vmem, size = 0x2000, scoped, tag = 'output window, operand 0']
    %8 = vsyncpa [#allocation3], 0
    %s9 = scalar_lea.sflag [#allocation3], 1
    %10 = vsyncpa %s9, 0
    %11 = vsyncpa [#allocation6], 0
    %12 = vsyncpa [#allocation4], 0
    %s13 = scalar_lea.sflag [#allocation4], 1
    %14 = vsyncpa %s13, 0
    loop: start=0, step=1, limit=4
    $region2: #{tpu_custom_call.1} parent=1 // loop_pre_header
      _
    $region3: #{tpu_custom_call.1} parent=1 // loop_header
      %s16 = sphi 0, %s20
      %p17 = scmp.ge.s32.totalorder %s16, 4
      %s26 = sphi 0, %s28
      %s29 = sphi 0, %s26
      %s30 = sphi 0, %s29
      %s46 = sphi 0, %s30
      %s50 = sphi 0, %s50
      %s52 = sphi 0, %s50
      %s53 = sphi 0, %s52
      %s67 = sphi 0, %s53
      %s71 = sphi 0, %s71
      %s73 = sphi 0, %s71
      %s74 = sphi 0, %s73
      %s88 = sphi 0, %s74
      %s94 = sphi 0, %s96
      %s97 = sphi 0, %s94
      %s98 = sphi 0, %s97
      %s114 = sphi 0, %s98
    $region4: #{tpu_custom_call.1} parent=1 // loop_header_branch
      %19 = sbr.rel (%p17) target = $region8
    $region5: #{tpu_custom_call.1} parent=1 // loop_body
      %s21 = ssub.s32 %s16, 1
      %s22 = ssub.s32 %s16, 2
      %s23 = sadd.s32 %s16, 1
      %s24 = ssub.s32 %s16, %s23
      %p25 = scmp.eq.s32.totalorder %s24, 0
      %s27 = sadd.s32 %s26, 1
      %s28 = scalar_select %p25, %s26, %s27
      %p31 = pneg %p25
      %p32 = scmp.eq.s32.totalorder %s16, 1
      %p33 = por %p31, %p32
      %p34 = scmp.ne.s32.totalorder %s26, %s29
      %p35 = scmp.eq.s32.totalorder %s16, 0
      %p36 = por %p34, %p35
      %p37 = scmp.ne.s32.totalorder %s26, %s29
      %p38 = scmp.eq.s32.totalorder %s21, 1
      %p39 = por %p37, %p38
      %p40 = scmp.ne.s32.totalorder %s29, %s30
      %p41 = scmp.eq.s32.totalorder %s21, 0
      %p42 = por %p40, %p41
      %p43 = scmp.ne.s32.totalorder %s29, %s30
      %p44 = scmp.eq.s32.totalorder %s22, 1
      %p45 = por %p43, %p44
      %p47 = scmp.ne.s32.totalorder %s30, %s46
      %p48 = scmp.eq.s32.totalorder %s22, 0
      %p49 = por %p47, %p48
      %s51 = sadd.s32 %s50, 1
      %p54 = scmp.eq.s32.totalorder %s16, 1
      %p55 = scmp.ne.s32.totalorder %s50, %s52
      %p56 = scmp.eq.s32.totalorder %s16, 0
      %p57 = por %p55, %p56
      %p58 = scmp.ne.s32.totalorder %s50, %s52
      %p59 = scmp.eq.s32.totalorder %s21, 1
      %p60 = por %p58, %p59
      %p61 = scmp.ne.s32.totalorder %s52, %s53
      %p62 = scmp.eq.s32.totalorder %s21, 0
      %p63 = por %p61, %p62
      %p64 = scmp.ne.s32.totalorder %s52, %s53
      %p65 = scmp.eq.s32.totalorder %s22, 1
      %p66 = por %p64, %p65
      %p68 = scmp.ne.s32.totalorder %s53, %s67
      %p69 = scmp.eq.s32.totalorder %s22, 0
      %p70 = por %p68, %p69
      %s72 = sadd.s32 %s71, 1
      %p75 = scmp.eq.s32.totalorder %s16, 1
      %p76 = scmp.ne.s32.totalorder %s71, %s73
      %p77 = scmp.eq.s32.totalorder %s16, 0
      %p78 = por %p76, %p77
      %p79 = scmp.ne.s32.totalorder %s71, %s73
      %p80 = scmp.eq.s32.totalorder %s21, 1
      %p81 = por %p79, %p80
      %p82 = scmp.ne.s32.totalorder %s73, %s74
      %p83 = scmp.eq.s32.totalorder %s21, 0
      %p84 = por %p82, %p83
      %p85 = scmp.ne.s32.totalorder %s73, %s74
      %p86 = scmp.eq.s32.totalorder %s22, 1
      %p87 = por %p85, %p86
      %p89 = scmp.ne.s32.totalorder %s74, %s88
      %p90 = scmp.eq.s32.totalorder %s22, 0
      %p91 = por %p89, %p90
      %s92 = ssub.s32 %s16, %s23
      %p93 = scmp.eq.s32.totalorder %s92, 0
      %s95 = sadd.s32 %s94, 1
      %s96 = scalar_select %p93, %s94, %s95
      %p99 = pneg %p93
      %p100 = scmp.eq.s32.totalorder %s16, 1
      %p101 = por %p99, %p100
      %p102 = scmp.ne.s32.totalorder %s94, %s97
      %p103 = scmp.eq.s32.totalorder %s16, 0
      %p104 = por %p102, %p103
      %p105 = scmp.ne.s32.totalorder %s94, %s97
      %p106 = scmp.eq.s32.totalorder %s21, 1
      %p107 = por %p105, %p106
      %p108 = scmp.ne.s32.totalorder %s97, %s98
      %p109 = scmp.eq.s32.totalorder %s21, 0
      %p110 = por %p108, %p109
      %p111 = scmp.ne.s32.totalorder %s97, %s98
      %p112 = scmp.eq.s32.totalorder %s22, 1
      %p113 = por %p111, %p112
      %p115 = scmp.ne.s32.totalorder %s98, %s114
      %p116 = scmp.eq.s32.totalorder %s22, 0
      %p117 = por %p115, %p116
      %p118 = scmp.le.s32.totalorder 1, %s16
      %p119 = scmp.lt.s32.totalorder %s16, 3
      %p120 = pnand %p118, %p119
      %p121 = pneg %p120
      // Predicated region
      $region9: #{tpu_custom_call.1} parent=5 // pred_check
        _
      $region10: #{tpu_custom_call.1} parent=5 // pred_check_branch
        %123 = sbr.rel (%p120) target = $region12
      $region11: #{tpu_custom_call.1} parent=5 // pred_region
        %s124 = ssub.s32 %s16, 1
        // Predicated region
        $region13: #{tpu_custom_call.1} parent=11 // pred_check
          %p125 = pneg %p63
        $region14: #{tpu_custom_call.1} parent=11 // pred_check_branch
          %127 = sbr.rel (%p125) target = $region16
        $region15: #{tpu_custom_call.1} parent=11 // pred_region
          %s129 = ssub.s32 512, 512
          %130 = vsyncadd [#allocation6], %s129
          %s131 = sshll.u32 [#allocation5], 4
          %s132 = int_to_ptr.vmem [resolvable:$true] %s131
          %137 = dma.hbm_to_vmem [thread:$0]  %s1, 512, %s132, [#allocation6], 128, 128, 8
        $region16: #{tpu_custom_call.1} parent=11 // pred_fallthru
          _
        // Predicated region
        $region17: #{tpu_custom_call.1} parent=11 // pred_check
          %p138 = pneg %p84
        $region18: #{tpu_custom_call.1} parent=11 // pred_check_branch
          %140 = sbr.rel (%p138) target = $region20
        $region19: #{tpu_custom_call.1} parent=11 // pred_region
          _
        $region20: #{tpu_custom_call.1} parent=11 // pred_fallthru
          _
      $region12: #{tpu_custom_call.1} parent=5 // pred_fallthru
        _
      %p141 = scmp.lt.s32.totalorder %s16, 2
      // Predicated region
      $region21: #{tpu_custom_call.1} parent=5 // pred_check
        %p142 = pneg %p141
      $region22: #{tpu_custom_call.1} parent=5 // pred_check_branch
        %144 = sbr.rel (%p142) target = $region24
      $region23: #{tpu_custom_call.1} parent=5 // pred_region
        // Predicated region
        $region25: #{tpu_custom_call.1} parent=23 // pred_check
          %p145 = pneg %p36
        $region26: #{tpu_custom_call.1} parent=23 // pred_check_branch
          %147 = sbr.rel (%p145) target = $region28
        $region27: #{tpu_custom_call.1} parent=23 // pred_region
          %s148 = sand.u32 %s26, 1
          %s149 = scalar_lea.sflag [#allocation3], %s148
          %s150 = sand.u32 %s26, 1
          %s151 = smul.addr %s150, 8
          %s152 = scalar_lea.vmem [#allocation2], %s151
          %s154 = ssub.s32 128, 128
          %155 = vsyncadd %s149, %s154
          %s156 = smul.addr %s16, 128
          %s157 = scalar_lea.hbm %s0, %s156
          %s159 = sshll.u32 %s152, 4
          %s160 = int_to_ptr.vmem [resolvable:$true] %s159
          %162 = dma.hbm_to_vmem [thread:$0]  %s157, 128, %s160, %s149
        $region28: #{tpu_custom_call.1} parent=23 // pred_fallthru
          _
      $region24: #{tpu_custom_call.1} parent=5 // pred_fallthru
        _
      %p163 = scmp.le.s32.totalorder 1, %s16
      %p164 = scmp.lt.s32.totalorder %s16, 3
      %p165 = pnand %p163, %p164
      %p166 = pneg %p165
      // Predicated region
      $region29: #{tpu_custom_call.1} parent=5 // pred_check
        _
      $region30: #{tpu_custom_call.1} parent=5 // pred_check_branch
        %168 = sbr.rel (%p165) target = $region32
      $region31: #{tpu_custom_call.1} parent=5 // pred_region
        %s169 = ssub.s32 %s16, 1
        %s170 = sand.u32 %s29, 1
        %s171 = scalar_lea.sflag [#allocation3], %s170
        %s172 = sand.u32 %s29, 1
        %s173 = smul.addr %s172, 8
        %s174 = scalar_lea.vmem [#allocation2], %s173
        // Predicated region
        $region33: #{tpu_custom_call.1} parent=31 // pred_check
          %p175 = pneg %p42
        $region34: #{tpu_custom_call.1} parent=31 // pred_check_branch
          %177 = sbr.rel (%p175) target = $region36
        $region35: #{tpu_custom_call.1} parent=31 // pred_region
          %178 = dma.done %s171, 128
        $region36: #{tpu_custom_call.1} parent=31 // pred_fallthru
          _
        // Predicated region
        $region37: #{tpu_custom_call.1} parent=31 // pred_check
          %p179 = pneg %p63
        $region38: #{tpu_custom_call.1} parent=31 // pred_check_branch
          %181 = sbr.rel (%p179) target = $region40
        $region39: #{tpu_custom_call.1} parent=31 // pred_region
          %182 = dma.done [#allocation6], 512
        $region40: #{tpu_custom_call.1} parent=31 // pred_fallthru
          _
        %s183 = sand.u32 %s29, 1
        %s184 = scalar_lea.sflag [#allocation3], %s183
        %s185 = sand.u32 %s29, 1
        %s186 = smul.addr %s185, 8
        %s187 = scalar_lea.vmem [#allocation2], %s186
        %p188 = pneg %p42
        %p189 = pneg %p39
        %p190 = pneg %p63
        %p191 = pneg %p60
        %p192 = pneg %p84
        %p193 = pneg %p81
        %p194 = pneg %p110
        %p195 = pneg %p107
        %s196 = sand.u32 %s97, 1
        %s197 = scalar_lea.sflag [#allocation4], %s196
        %s198 = sand.u32 %s97, 1
        %s199 = smul.addr %s198, 8
        %s200 = scalar_lea.vmem [#allocation7], %s199
        %v201 = vld [vmem:[%s174] sm:$0xff]
        %v202 = vld [vmem:[#allocation5] sm:$0xff]
        %v203 = vld [vmem:[#allocation5 + $0x8] sm:$0xff]
        %v204 = vld [vmem:[#allocation5 + $0x10] sm:$0xff]
        %v205 = vld [vmem:[#allocation5 + $0x18] sm:$0xff]
        %v206 = vld [vmem:[%s2] sm:$0x1]
        %v208 = vlaneseq
        %v209 = vshrl.u32 %v208, 7
        %v210 = vsub.s32 0, %v209
        %v211 = vrot.slane %v206, %v210
        %vm213 = vcmask 261120
        %v215 = vsel %vm213, %v201, 0
        %217 = vmatprep.subr.mxu0 0.0
        %218 = vmatpush1.msra.mxu0 0.0
        %219 = vmatprep.subr.mxu0 0.0
        %220 = vmatpush1.msra.mxu0 0.0
        %221 = vmatprep.subr.mxu0 0.0
        %222 = vmatpush1.msra.mxu0 0.0
        %223 = vmatprep.subr.mxu0 0.0
        %224 = vmatpush1.msra.mxu0 0.0
        %225 = vmatprep.subr.mxu0 0.0
        %226 = vmatpush1.msra.mxu0 0.0
        %227 = vmatprep.subr.mxu0 0.0
        %228 = vmatpush1.msra.mxu0 0.0
        %229 = vmatprep.subr.mxu0 0.0
        %230 = vmatpush1.msra.mxu0 0.0
        %231 = vmatprep.subr.mxu0 0.0
        %232 = vmatpush1.msra.mxu0 0.0
        %233 = vmatprep.subr.mxu0 0.0
        %234 = vmatpush1.msra.mxu0 0.0
        %235 = vmatprep.subr.mxu0 0.0
        %236 = vmatpush1.msra.mxu0 0.0
        %237 = vmatprep.subr.mxu0 0.0
        %238 = vmatpush1.msra.mxu0 0.0
        %239 = vmatprep.subr.mxu0 0.0
        %240 = vmatpush1.msra.mxu0 0.0
        %241 = vmatprep.subr.mxu0 0.0
        %242 = vmatpush1.msra.mxu0 %v205
        %243 = vmatprep.subr.mxu0 0.0
        %244 = vmatpush1.msra.mxu0 %v204
        %245 = vmatprep.subr.mxu0 0.0
        %246 = vmatpush1.msra.mxu0 %v203
        %247 = vmatprep.subr.mxu0 0.0
        %248 = vmatpush1.msra.mxu0 %v202
        %249 = vmatprep.subr.mxu0 0.0
        %250 = vmatpush2.msra.mxu0 0.0
        %251 = vmatprep.subr.mxu0 0.0
        %252 = vmatpush2.msra.mxu0 0.0
        %253 = vmatprep.subr.mxu0 0.0
        %254 = vmatpush2.msra.mxu0 0.0
        %255 = vmatprep.subr.mxu0 0.0
        %256 = vmatpush2.msra.mxu0 0.0
        %257 = vmatprep.subr.mxu0 0.0
        %258 = vmatpush2.msra.mxu0 0.0
        %259 = vmatprep.subr.mxu0 0.0
        %260 = vmatpush2.msra.mxu0 0.0
        %261 = vmatprep.subr.mxu0 0.0
        %262 = vmatpush2.msra.mxu0 0.0
        %263 = vmatprep.subr.mxu0 0.0
        %264 = vmatpush2.msra.mxu0 0.0
        %265 = vmatprep.subr.mxu0 0.0
        %266 = vmatpush2.msra.mxu0 0.0
        %267 = vmatprep.subr.mxu0 0.0
        %268 = vmatpush2.msra.mxu0 0.0
        %269 = vmatprep.subr.mxu0 0.0
        %270 = vmatpush2.msra.mxu0 0.0
        %271 = vmatprep.subr.mxu0 0.0
        %272 = vmatpush2.msra.mxu0 0.0
        %273 = vmatprep.subr.mxu0 0.0
        %274 = vmatpush2.msra.mxu0 0.0
        %275 = vmatprep.subr.mxu0 0.0
        %276 = vmatpush2.msra.mxu0 0.0
        %277 = vmatprep.subr.mxu0 0.0
        %278 = vmatpush2.msra.mxu0 0.0
        %279 = vmatprep.subr.mxu0 0.0
        %280 = vmatpush2.msra.mxu0 0.0
        %281 = vmatprep.mubr.f32.mxu0 0.0
        %282 = vmatmul.mubr.f32.gmra.mxu0 %v215
        %v283 = vpop.f32.mrf.mxu0
        %v284 = vadd.f32 %v211, %v283
        %v285 = vpop.f32.mrf.mxu0
        %286 = vdwg.mxu0
        %288 = vrot.lane.b32.xlu0 %v284, 96
        %v289 = vpop.permute.xlu0 %288
        %v290 = vsel %vm213, %v284, 0
        %v292 = vsel %vm213, %v289, 0
        %294 = vmatprep.subr.mxu0 0.0
        %295 = vmatpush1.xpose.msra.mxu0 0.0
        %296 = vmatprep.subr.mxu0 0.0
        %297 = vmatpush1.xpose.msra.mxu0 0.0
        %298 = vmatprep.subr.mxu0 0.0
        %299 = vmatpush1.xpose.msra.mxu0 0.0
        %300 = vmatprep.subr.mxu0 0.0
        %301 = vmatpush1.xpose.msra.mxu0 0.0
        %302 = vmatprep.subr.mxu0 0.0
        %303 = vmatpush1.xpose.msra.mxu0 0.0
        %304 = vmatprep.subr.mxu0 0.0
        %305 = vmatpush1.xpose.msra.mxu0 0.0
        %306 = vmatprep.subr.mxu0 0.0
        %307 = vmatpush1.xpose.msra.mxu0 0.0
        %308 = vmatprep.subr.mxu0 0.0
        %309 = vmatpush1.xpose.msra.mxu0 0.0
        %310 = vmatprep.subr.mxu0 0.0
        %311 = vmatpush1.xpose.msra.mxu0 0.0
        %312 = vmatprep.subr.mxu0 0.0
        %313 = vmatpush1.xpose.msra.mxu0 0.0
        %314 = vmatprep.subr.mxu0 0.0
        %315 = vmatpush1.xpose.msra.mxu0 0.0
        %316 = vmatprep.subr.mxu0 0.0
        %317 = vmatpush1.xpose.msra.mxu0 0.0
        %318 = vmatprep.subr.mxu0 0.0
        %319 = vmatpush1.xpose.msra.mxu0 0.0
        %320 = vmatprep.subr.mxu0 0.0
        %321 = vmatpush1.xpose.msra.mxu0 0.0
        %322 = vmatprep.subr.mxu0 0.0
        %323 = vmatpush1.xpose.msra.mxu0 0.0
        %324 = vmatprep.subr.mxu0 0.0
        %325 = vmatpush1.xpose.msra.mxu0 %v292
        %326 = vmatprep.subr.mxu0 0.0
        %327 = vmatpush2.xpose.msra.mxu0 0.0
        %328 = vmatprep.subr.mxu0 0.0
        %329 = vmatpush2.xpose.msra.mxu0 0.0
        %330 = vmatprep.subr.mxu0 0.0
        %331 = vmatpush2.xpose.msra.mxu0 0.0
        %332 = vmatprep.subr.mxu0 0.0
        %333 = vmatpush2.xpose.msra.mxu0 0.0
        %334 = vmatprep.subr.mxu0 0.0
        %335 = vmatpush2.xpose.msra.mxu0 0.0
        %336 = vmatprep.subr.mxu0 0.0
        %337 = vmatpush2.xpose.msra.mxu0 0.0
        %338 = vmatprep.subr.mxu0 0.0
        %339 = vmatpush2.xpose.msra.mxu0 0.0
        %340 = vmatprep.subr.mxu0 0.0
        %341 = vmatpush2.xpose.msra.mxu0 0.0
        %342 = vmatprep.subr.mxu0 0.0
        %343 = vmatpush2.xpose.msra.mxu0 0.0
        %344 = vmatprep.subr.mxu0 0.0
        %345 = vmatpush2.xpose.msra.mxu0 0.0
        %346 = vmatprep.subr.mxu0 0.0
        %347 = vmatpush2.xpose.msra.mxu0 0.0
        %348 = vmatprep.subr.mxu0 0.0
        %349 = vmatpush2.xpose.msra.mxu0 0.0
        %350 = vmatprep.subr.mxu0 0.0
        %351 = vmatpush2.xpose.msra.mxu0 0.0
        %352 = vmatprep.subr.mxu0 0.0
        %353 = vmatpush2.xpose.msra.mxu0 0.0
        %354 = vmatprep.subr.mxu0 0.0
        %355 = vmatpush2.xpose.msra.mxu0 0.0
        %356 = vmatprep.subr.mxu0 0.0
        %357 = vmatpush2.xpose.msra.mxu0 0.0
        %358 = vmatprep.mubr.f32.mxu0 0.0
        %359 = vmatmul.mubr.f32.gmra.mxu0 %v290
        %v360 = vpop.f32.mrf.mxu0
        %v361 = vadd.f32 0.0, %v360
        %v362 = vpop.f32.mrf.mxu0
        %363 = vdwg.mxu0
        %vm364 = vcmask 64512
        %v365 = vsel %vm364, %v361, -inf
        %366 = vmax.xlane.f32.xlu0 %v365
        %v367 = vpop.xlane.xlu0 %366
        %v368 = vsub.f32 %v361, %v367
        %v369 = vmul.f32 %v368, 1.442695
        %v370 = vpow.pop %v369
        %v371 = vsel %vm364, %v370, 0.0
        %372 = vadd.xlane.f32.xlu0 %v371
        %v373 = vpop.xlane.xlu0 %372
        %v374 = vrcp.pop %v373
        %v375 = vmul.f32 %v370, %v374
        %376 = vrot.lane.b32.xlu0 %v284, 64
        %v377 = vpop.permute.xlu0 %376
        %v380 = vsel %vm364, %v375, 0
        %382 = vmatprep.subr.mxu0 0.0
        %383 = vmatpush1.msra.mxu0 0.0
        %384 = vmatprep.subr.mxu0 0.0
        %385 = vmatpush1.msra.mxu0 0.0
        %386 = vmatprep.subr.mxu0 0.0
        %387 = vmatpush1.msra.mxu0 0.0
        %388 = vmatprep.subr.mxu0 0.0
        %389 = vmatpush1.msra.mxu0 0.0
        %390 = vmatprep.subr.mxu0 0.0
        %391 = vmatpush1.msra.mxu0 0.0
        %392 = vmatprep.subr.mxu0 0.0
        %393 = vmatpush1.msra.mxu0 0.0
        %394 = vmatprep.subr.mxu0 0.0
        %395 = vmatpush1.msra.mxu0 0.0
        %396 = vmatprep.subr.mxu0 0.0
        %397 = vmatpush1.msra.mxu0 0.0
        %398 = vmatprep.subr.mxu0 0.0
        %399 = vmatpush1.msra.mxu0 0.0
        %400 = vmatprep.subr.mxu0 0.0
        %401 = vmatpush1.msra.mxu0 0.0
        %402 = vmatprep.subr.mxu0 0.0
        %403 = vmatpush1.msra.mxu0 0.0
        %404 = vmatprep.subr.mxu0 0.0
        %405 = vmatpush1.msra.mxu0 0.0
        %406 = vmatprep.subr.mxu0 0.0
        %407 = vmatpush1.msra.mxu0 0.0
        %408 = vmatprep.subr.mxu0 0.0
        %409 = vmatpush1.msra.mxu0 0.0
        %410 = vmatprep.subr.mxu0 0.0
        %411 = vmatpush1.msra.mxu0 0.0
        %412 = vmatprep.subr.mxu0 0.0
        %413 = vmatpush1.msra.mxu0 %v377
        %414 = vmatprep.subr.mxu0 0.0
        %415 = vmatpush2.msra.mxu0 0.0
        %416 = vmatprep.subr.mxu0 0.0
        %417 = vmatpush2.msra.mxu0 0.0
        %418 = vmatprep.subr.mxu0 0.0
        %419 = vmatpush2.msra.mxu0 0.0
        %420 = vmatprep.subr.mxu0 0.0
        %421 = vmatpush2.msra.mxu0 0.0
        %422 = vmatprep.subr.mxu0 0.0
        %423 = vmatpush2.msra.mxu0 0.0
        %424 = vmatprep.subr.mxu0 0.0
        %425 = vmatpush2.msra.mxu0 0.0
        %426 = vmatprep.subr.mxu0 0.0
        %427 = vmatpush2.msra.mxu0 0.0
        %428 = vmatprep.subr.mxu0 0.0
        %429 = vmatpush2.msra.mxu0 0.0
        %430 = vmatprep.subr.mxu0 0.0
        %431 = vmatpush2.msra.mxu0 0.0
        %432 = vmatprep.subr.mxu0 0.0
        %433 = vmatpush2.msra.mxu0 0.0
        %434 = vmatprep.subr.mxu0 0.0
        %435 = vmatpush2.msra.mxu0 0.0
        %436 = vmatprep.subr.mxu0 0.0
        %437 = vmatpush2.msra.mxu0 0.0
        %438 = vmatprep.subr.mxu0 0.0
        %439 = vmatpush2.msra.mxu0 0.0
        %440 = vmatprep.subr.mxu0 0.0
        %441 = vmatpush2.msra.mxu0 0.0
        %442 = vmatprep.subr.mxu0 0.0
        %443 = vmatpush2.msra.mxu0 0.0
        %444 = vmatprep.subr.mxu0 0.0
        %445 = vmatpush2.msra.mxu0 0.0
        %446 = vmatprep.mubr.f32.mxu0 0.0
        %447 = vmatmul.mubr.f32.gmra.mxu0 %v380
        %v448 = vpop.f32.mrf.mxu0
        %v449 = vadd.f32 0.0, %v448
        %v450 = vpop.f32.mrf.mxu0
        %451 = vdwg.mxu0
        %452 = vst.msk [vmem:[%s200] sm:$0xff] %vm213, %v449
        %s453 = sand.u32 %s97, 1
        %s454 = scalar_lea.sflag [#allocation4], %s453
        %s455 = sand.u32 %s97, 1
        %s456 = smul.addr %s455, 8
        %s457 = scalar_lea.vmem [#allocation7], %s456
        // Predicated region
        $region41: #{tpu_custom_call.1} parent=31 // pred_check
          %p458 = pneg %p107
        $region42: #{tpu_custom_call.1} parent=31 // pred_check_branch
          %460 = sbr.rel (%p458) target = $region44
        $region43: #{tpu_custom_call.1} parent=31 // pred_region
          %s462 = ssub.s32 128, 128
          %463 = vsyncadd %s454, %s462
          %s464 = smul.addr %s21, 128
          %s465 = scalar_lea.hbm %s3, %s464
          %s467 = sshll.u32 %s457, 4
          %s468 = int_to_ptr.vmem [resolvable:$true] %s467
          %470 = dma.vmem_to_hbm [thread:$0]  %s468, 128, %s465, %s454
        $region44: #{tpu_custom_call.1} parent=31 // pred_fallthru
          _
      $region32: #{tpu_custom_call.1} parent=5 // pred_fallthru
        _
      %p471 = scmp.le.s32.totalorder 2, %s16
      // Predicated region
      $region45: #{tpu_custom_call.1} parent=5 // pred_check
        %p472 = pneg %p471
      $region46: #{tpu_custom_call.1} parent=5 // pred_check_branch
        %474 = sbr.rel (%p472) target = $region48
      $region47: #{tpu_custom_call.1} parent=5 // pred_region
        %s475 = ssub.s32 %s16, 2
        // Predicated region
        $region49: #{tpu_custom_call.1} parent=47 // pred_check
          %p476 = pneg %p113
        $region50: #{tpu_custom_call.1} parent=47 // pred_check_branch
          %478 = sbr.rel (%p476) target = $region52
        $region51: #{tpu_custom_call.1} parent=47 // pred_region
          %s479 = sand.u32 %s98, 1
          %s480 = scalar_lea.sflag [#allocation4], %s479
          %s481 = sand.u32 %s98, 1
          %s482 = smul.addr %s481, 8
          %s483 = scalar_lea.vmem [#allocation7], %s482
          %484 = dma.done %s480, 128
        $region52: #{tpu_custom_call.1} parent=47 // pred_fallthru
          _
      $region48: #{tpu_custom_call.1} parent=5 // pred_fallthru
        _
    $region6: #{tpu_custom_call.1} parent=1 // loop_footer
      %s20 = sadd.s32 1, %s16
    $region7: #{tpu_custom_call.1} parent=1 // loop_footer_branch
      %15 = sbr.rel target = $region3
    $region8: #{tpu_custom_call.1} parent=1 // loop_exit
      _
    %485 = vsyncpa [#allocation3], 1
    %s486 = scalar_lea.sflag [#allocation3], 1
    %487 = vsyncpa %s486, 1
    %488 = vsyncpa [#allocation6], 1
    %489 = vsyncpa [#allocation4], 1
    %s490 = scalar_lea.sflag [#allocation4], 1
    %491 = vsyncpa %s490, 1

</llo_original>
